<compile_context>
chip_gen: v7x
topology: tpu7x:2x2x1
jax: 0.10.0
libtpu: 0.0.40
codegen_flags: <defaults>
</compile_context>

<pallas_src>
import functools

import jax
import jax.numpy as jnp
from jax.experimental import pallas as pl
from jax.experimental.pallas import tpu as pltpu


def _round_up(x: int, m: int) -> int:
    return ((x + m - 1) // m) * m


def _vmem_cap_bytes() -> int:
    """Per-generation scoped-VMEM cap."""
    try:
        total = int(pltpu.get_tpu_info().vmem_capacity_bytes)
    except Exception:
        total = 64 << 20  # conservative default (v7x per-TensorCore)
    if total >= (96 << 20):      # v5e / v6e: 128 MiB physical
        return 100 << 20
    return 48 << 20              # v7x: 64 MiB physical, leave Mosaic headroom


def _vmem_limit(needed_bytes: int) -> int:
    return int(min(max(needed_bytes + (8 << 20), 16 << 20), _vmem_cap_bytes()))


# --------------------------------------------------------------------------
# Kernel 1: layers 1 & 2 (Linear+ReLU, Linear+ReLU) -- runs once, all VMEM.
# --------------------------------------------------------------------------
def _hidden_kernel(x_ref, w1_ref, b1_ref, w2_ref, b2_ref, h2_ref, *, n_rows):
    h1 = jnp.dot(x_ref[...], w1_ref[...], preferred_element_type=jnp.float32)
    h1 = jnp.maximum(h1 + b1_ref[...], 0.0).astype(jnp.bfloat16)
    h2 = jnp.dot(h1, w2_ref[...], preferred_element_type=jnp.float32)
    h2 = jnp.maximum(h2 + b2_ref[...], 0.0)
    # Zero the padded batch rows so nothing downstream sees junk.
    row = jax.lax.broadcasted_iota(jnp.int32, h2.shape, 0)
    h2 = jnp.where(row < n_rows, h2, 0.0)
    h2_ref[...] = h2.astype(h2_ref.dtype)


# --------------------------------------------------------------------------
# Kernel 2: vocab projection, streaming contiguous W3 tiles over a 1-D grid.
# --------------------------------------------------------------------------
def _vocab_proj_kernel(h2_ref, w3_ref, b3_ref, o_ref):
    j = pl.program_id(0)
    logits = jnp.dot(h2_ref[...], w3_ref[...], preferred_element_type=jnp.float32)
    o_ref[...] = logits + b3_ref[j]          # b3_ref[j]: (1, TN), resident in VMEM


# --------------------------------------------------------------------------
# One-time parameter preparation (padding + tile-major W3 layout).
# --------------------------------------------------------------------------
def prepare_params(params, *, tn: int = 2048):
    """Pad / re-layout the weights once; forward only pads the activations."""
    w1, b1, w2, b2, w3, b3 = (params["w1"], params["b1"], params["w2"],
                              params["b2"], params["w3"], params["b3"])
    D_in, H = w1.shape
    V = w3.shape[1]

    D_pad = _round_up(D_in, 128)
    H_pad = _round_up(H, 128)
    V128 = _round_up(V, 128)
    tn_req = max(128, _round_up(tn, 128))
    n_vt = -(-V128 // tn_req)                       # ceil-div
    TN = _round_up(-(-V128 // n_vt), 128)           # rebalance -> waste < 128/tile
    V_pad = n_vt * TN

    f32, bf16 = jnp.float32, jnp.bfloat16
    w1_p = jnp.zeros((D_pad, H_pad), bf16).at[:D_in, :H].set(w1.astype(bf16))
    b1_p = jnp.zeros((1, H_pad), f32).at[:, :H].set(jnp.reshape(b1, (1, -1)).astype(f32))
    w2_p = jnp.zeros((H_pad, H_pad), bf16).at[:H, :H].set(w2.astype(bf16))
    b2_p = jnp.zeros((1, H_pad), f32).at[:, :H].set(jnp.reshape(b2, (1, -1)).astype(f32))

    # Tile-major W3: (n_vt, H_pad, TN) so each streamed tile is one contiguous DMA.
    w3_flat = jnp.zeros((H_pad, V_pad), bf16).at[:H, :V].set(w3.astype(bf16))
    w3_tiles = w3_flat.reshape(H_pad, n_vt, TN).transpose(1, 0, 2)
    b3_flat = jnp.zeros((1, V_pad), f32).at[:, :V].set(jnp.reshape(b3, (1, -1)).astype(f32))
    b3_tiles = b3_flat.reshape(n_vt, 1, TN)

    return {"w1": w1_p, "b1": b1_p, "w2": w2_p, "b2": b2_p,
            "w3_tiles": w3_tiles, "b3_tiles": b3_tiles}


# --------------------------------------------------------------------------
# Forward pass.
# --------------------------------------------------------------------------
def entity_predictor_forward(avg_feats, prepared, *, vocab_size: int):
    """avg_feats: (B, D_in) float32 -> (B, vocab_size) float32 logits."""
    w1_p, b1_p = prepared["w1"], prepared["b1"]
    w2_p, b2_p = prepared["w2"], prepared["b2"]
    w3_t, b3_t = prepared["w3_tiles"], prepared["b3_tiles"]

    B, D_in = avg_feats.shape
    D_pad, H_pad = w1_p.shape
    n_vt, _, TN = w3_t.shape
    V_pad = n_vt * TN
    assert D_in <= D_pad and vocab_size <= V_pad

    bf16, f32 = jnp.bfloat16, jnp.float32
    B_pad = _round_up(max(B, 8), 8)

    # Only the (small) activation is padded per call.
    x_p = jnp.zeros((B_pad, D_pad), bf16).at[:B, :D_in].set(avg_feats.astype(bf16))

    # ---- Kernel 1: hidden MLP (single shot, whole arrays in VMEM) ----
    hid_bytes = (x_p.size * 2 + w1_p.size * 2 + b1_p.size * 4
                 + w2_p.size * 2 + b2_p.size * 4 + B_pad * H_pad * 2)
    hid_cost = pl.CostEstimate(
        flops=2 * B_pad * (D_pad * H_pad + H_pad * H_pad),
        transcendentals=0,
        bytes_accessed=hid_bytes)
    h2 = pl.pallas_call(
        functools.partial(_hidden_kernel, n_rows=B),
        out_shape=jax.ShapeDtypeStruct((B_pad, H_pad), bf16),
        compiler_params=pltpu.CompilerParams(vmem_limit_bytes=_vmem_limit(hid_bytes)),
        cost_estimate=hid_cost,
    )(x_p, w1_p, b1_p, w2_p, b2_p)

    # ---- Kernel 2: vocab projection, W3 tiles streamed (double-buffered) ----
    proj_vmem = (2 * B_pad * H_pad * 2        # h2 resident (tiny)
                 + 2 * n_vt * 8 * TN * 4      # b3 resident (sublane-padded)
                 + 2 * H_pad * TN * 2         # W3 tile, double-buffered
                 + 2 * B_pad * TN * 4)        # out tile, double-buffered
    proj_cost = pl.CostEstimate(
        flops=2 * B_pad * H_pad * V_pad,
        transcendentals=0,
        bytes_accessed=(B_pad * H_pad * 2 + w3_t.size * 2 + b3_t.size * 4
                        + B_pad * V_pad * 4))
    grid_spec = pltpu.PrefetchScalarGridSpec(
        num_scalar_prefetch=0,
        grid=(n_vt,),
        in_specs=[
            pl.BlockSpec((B_pad, H_pad), lambda j: (0, 0)),        # h2  (resident)
            pl.BlockSpec((None, H_pad, TN), lambda j: (j, 0, 0)),  # W3  (streamed, contiguous)
            pl.BlockSpec((n_vt, 1, TN), lambda j: (0, 0, 0)),      # b3  (resident)
        ],
        out_specs=pl.BlockSpec((B_pad, TN), lambda j: (0, j)),
    )
    out_p = pl.pallas_call(
        _vocab_proj_kernel,
        out_shape=jax.ShapeDtypeStruct((B_pad, V_pad), f32),
        grid_spec=grid_spec,
        compiler_params=pltpu.CompilerParams(
            dimension_semantics=("parallel",),   # shard V-tiles across TCs (v7x)
            vmem_limit_bytes=_vmem_limit(proj_vmem)),
        cost_estimate=proj_cost,
    )(h2, w3_t, b3_t)

    return out_p[:B, :vocab_size]


# --------------------------------------------------------------------------
# Parameter init (mirrors the PyTorch module's shapes).
# --------------------------------------------------------------------------
def init_params(key, visual_feat_size, vocab_size, hidden_size=512,
                dataset_name="iu_xray"):
    input_dim = visual_feat_size * 2 if dataset_name == "iu_xray" else visual_feat_size
    k1, k2, k3 = jax.random.split(key, 3)
    scale = 0.02
    # Weights stored in bf16 (bandwidth-bound head); biases in f32.
    return {
        "w1": (scale * jax.random.normal(k1, (input_dim, hidden_size), jnp.float32)
               ).astype(jnp.bfloat16),
        "b1": jnp.zeros((1, hidden_size), jnp.float32),
        "w2": (scale * jax.random.normal(k2, (hidden_size, hidden_size), jnp.float32)
               ).astype(jnp.bfloat16),
        "b2": jnp.zeros((1, hidden_size), jnp.float32),
        "w3": (scale * jax.random.normal(k3, (hidden_size, vocab_size), jnp.float32)
               ).astype(jnp.bfloat16),
        "b3": jnp.zeros((1, vocab_size), jnp.float32),
    }


# --------------------------------------------------------------------------
# References.
# --------------------------------------------------------------------------
def _reference_forward_bf16(avg_feats, params):
    """Pure-JAX reference mirroring the kernel's bf16 activation casts."""
    f32, bf16 = jnp.float32, jnp.bfloat16
    hi = jax.lax.Precision.HIGHEST
    x = avg_feats.astype(bf16).astype(f32)
    w1, b1 = params["w1"].astype(f32), params["b1"].astype(f32).reshape(1, -1)
    w2, b2 = params["w2"].astype(f32), params["b2"].astype(f32).reshape(1, -1)
    w3, b3 = params["w3"].astype(f32), params["b3"].astype(f32).reshape(1, -1)
    h1 = jnp.maximum(jnp.dot(x, w1, precision=hi) + b1, 0.0).astype(bf16).astype(f32)
    h2 = jnp.maximum(jnp.dot(h1, w2, precision=hi) + b2, 0.0).astype(bf16).astype(f32)
    return jnp.dot(h2, w3, precision=hi) + b3


def _reference_forward_f32(avg_feats, params):
    """Pure-f32 reference (PyTorch-eval-mode semantics with these weights)."""
    f32 = jnp.float32
    hi = jax.lax.Precision.HIGHEST
    x = avg_feats.astype(f32)
    w1, b1 = params["w1"].astype(f32), params["b1"].astype(f32).reshape(1, -1)
    w2, b2 = params["w2"].astype(f32), params["b2"].astype(f32).reshape(1, -1)
    w3, b3 = params["w3"].astype(f32), params["b3"].astype(f32).reshape(1, -1)
    h1 = jnp.maximum(jnp.dot(x, w1, precision=hi) + b1, 0.0)
    h2 = jnp.maximum(jnp.dot(h1, w2, precision=hi) + b2, 0.0)
    return jnp.dot(h2, w3, precision=hi) + b3


if __name__ == "__main__":
    key = jax.random.PRNGKey(0)
    k_feat, k_param = jax.random.split(key)

    # Small shapes consistent with the module: two-view concat for iu_xray.
    batch = 2
    visual_feat_size = 32                 # -> input_dim = 64
    hidden_size = 32
    vocab_size = 300                      # >128 so tn=128 exercises 3 V-tiles
    dataset_name = "iu_xray"
    input_dim = visual_feat_size * 2

    avg_feats = jax.random.normal(k_feat, (batch, input_dim), jnp.float32)
    params = init_params(k_param, visual_feat_size, vocab_size,
                         hidden_size=hidden_size, dataset_name=dataset_name)

    fwd = jax.jit(entity_predictor_forward, static_argnames=("vocab_size",))

    # Multi-tile streaming path (grid = 3 V-tiles).
    prepared_small = prepare_params(params, tn=128)
    logits = jax.block_until_ready(
        fwd(avg_feats, prepared_small, vocab_size=vocab_size))
    assert logits.shape == (batch, vocab_size)

    ref_bf16 = _reference_forward_bf16(avg_feats, params)
    assert jnp.allclose(logits, ref_bf16, atol=5e-3, rtol=5e-3), \
        float(jnp.max(jnp.abs(logits - ref_bf16)))

    ref_f32 = _reference_forward_f32(avg_feats, params)
    assert jnp.allclose(logits, ref_f32, atol=1e-2, rtol=5e-2), \
        float(jnp.max(jnp.abs(logits - ref_f32)))

    # Default tile size (single V-tile at this toy vocab) must agree too.
    prepared_default = prepare_params(params)
    logits2 = jax.block_until_ready(
        fwd(avg_feats, prepared_default, vocab_size=vocab_size))
    assert jnp.allclose(logits2, ref_bf16, atol=5e-3, rtol=5e-3)

    print("KERNEL_OK")
</pallas_src>

<mosaic_0001>
module attributes {stable_mosaic.version = 11 : i64} {
  func.func @_hidden_kernel(%arg0: memref<8x128xbf16, #tpu.memory_space<vmem>>, %arg1: memref<128x128xbf16, #tpu.memory_space<vmem>>, %arg2: memref<1x128xf32, #tpu.memory_space<vmem>>, %arg3: memref<128x128xbf16, #tpu.memory_space<vmem>>, %arg4: memref<1x128xf32, #tpu.memory_space<vmem>>, %arg5: memref<8x128xbf16, #tpu.memory_space<vmem>>) attributes {dimension_semantics = [], scalar_prefetch = 0 : i64, scratch_operands = 0 : i64, tpu.core_type = #tpu.core_type<tc>} {
    %c0 = arith.constant 0 : index
    %c0_0 = arith.constant 0 : index
    %0 = vector.load %arg0[%c0, %c0_0] : memref<8x128xbf16, #tpu.memory_space<vmem>>, vector<8x128xbf16>
    %c0_1 = arith.constant 0 : index
    %c0_2 = arith.constant 0 : index
    %1 = vector.load %arg1[%c0_1, %c0_2] : memref<128x128xbf16, #tpu.memory_space<vmem>>, vector<128x128xbf16>
    %cst = arith.constant dense<0.000000e+00> : vector<8x128xf32>
    %2 = tpu.matmul %0, %1, %cst {dimension_numbers = #tpu.dot_dimension_numbers<[1], [0], [0], [1], [0, 0, 1, 1], [], []>} : vector<8x128xbf16>, vector<128x128xbf16>, vector<8x128xf32> -> vector<8x128xf32>
    %c0_3 = arith.constant 0 : index
    %c0_4 = arith.constant 0 : index
    %3 = vector.load %arg2[%c0_3, %c0_4] : memref<1x128xf32, #tpu.memory_space<vmem>>, vector<1x128xf32>
    %4 = vector.broadcast %3 : vector<1x128xf32> to vector<8x128xf32>
    %5 = arith.addf %2, %4 : vector<8x128xf32>
    %cst_5 = arith.constant 0.000000e+00 : f32
    %6 = vector.broadcast %cst_5 : f32 to vector<8x128xf32>
    %7 = arith.maximumf %5, %6 : vector<8x128xf32>
    %8 = arith.truncf %7 : vector<8x128xf32> to vector<8x128xbf16>
    %c0_6 = arith.constant 0 : index
    %c0_7 = arith.constant 0 : index
    %9 = vector.load %arg3[%c0_6, %c0_7] : memref<128x128xbf16, #tpu.memory_space<vmem>>, vector<128x128xbf16>
    %cst_8 = arith.constant dense<0.000000e+00> : vector<8x128xf32>
    %10 = tpu.matmul %8, %9, %cst_8 {dimension_numbers = #tpu.dot_dimension_numbers<[1], [0], [0], [1], [0, 0, 1, 1], [], []>} : vector<8x128xbf16>, vector<128x128xbf16>, vector<8x128xf32> -> vector<8x128xf32>
    %c0_9 = arith.constant 0 : index
    %c0_10 = arith.constant 0 : index
    %11 = vector.load %arg4[%c0_9, %c0_10] : memref<1x128xf32, #tpu.memory_space<vmem>>, vector<1x128xf32>
    %12 = vector.broadcast %11 : vector<1x128xf32> to vector<8x128xf32>
    %13 = arith.addf %10, %12 : vector<8x128xf32>
    %cst_11 = arith.constant 0.000000e+00 : f32
    %14 = vector.broadcast %cst_11 : f32 to vector<8x128xf32>
    %15 = arith.maximumf %13, %14 : vector<8x128xf32>
    %16 = tpu.iota {dimensions = array<i32: 0>} : vector<8x128xi32>
    %c2_i32 = arith.constant 2 : i32
    %17 = vector.broadcast %c2_i32 : i32 to vector<8x128xi32>
    %18 = arith.cmpi slt, %16, %17 : vector<8x128xi32>
    %cst_12 = arith.constant 0.000000e+00 : f32
    %19 = vector.broadcast %cst_12 : f32 to vector<8x128xf32>
    %20 = arith.select %18, %15, %19 : vector<8x128xi1>, vector<8x128xf32>
    %21 = arith.truncf %20 : vector<8x128xf32> to vector<8x128xbf16>
    %c0_13 = arith.constant 0 : index
    %c0_14 = arith.constant 0 : index
    %22 = vector.load %arg5[%c0_13, %c0_14] : memref<8x128xbf16, #tpu.memory_space<vmem>>, vector<8x128xbf16>
    tpu.vector_store %arg5[%c0_13, %c0_14], %21 {strides = array<i32>} : memref<8x128xbf16, #tpu.memory_space<vmem>>, vector<8x128xbf16>,
    return
  }
}

module attributes {stable_mosaic.version = 11 : i64} {
  func.func @_vocab_proj_kernel(%arg0: i32, %arg1: memref<8x128xbf16, #tpu.memory_space<vmem>>, %arg2: memref<1x128x128xbf16, #tpu.memory_space<vmem>>, %arg3: memref<3x1x128xf32, #tpu.memory_space<vmem>>, %arg4: memref<8x128xf32, #tpu.memory_space<vmem>>) attributes {dimension_semantics = [#tpu.dimension_semantics<parallel>], iteration_bounds = array<i64: 3>, scalar_prefetch = 0 : i64, scratch_operands = 0 : i64, tpu.core_type = #tpu.core_type<tc>, window_params = [{pipeline_mode = #tpu.pipeline_mode<synchronous>, transform_indices = @transform_0, window_bounds = array<i64: 8, 128>}, {transform_indices = @transform_1, window_bounds = array<i64: 1, 128, 128>}, {pipeline_mode = #tpu.pipeline_mode<synchronous>, transform_indices = @transform_2, window_bounds = array<i64: 3, 1, 128>}, {transform_indices = @transform_3, window_bounds = array<i64: 8, 128>}]} {
    %c0 = arith.constant 0 : index
    %c0_0 = arith.constant 0 : index
    %0 = vector.load %arg1[%c0, %c0_0] : memref<8x128xbf16, #tpu.memory_space<vmem>>, vector<8x128xbf16>
    %c0_1 = arith.constant 0 : index
    %c0_2 = arith.constant 0 : index
    %c0_3 = arith.constant 0 : index
    %1 = vector.load %arg2[%c0_1, %c0_2, %c0_3] : memref<1x128x128xbf16, #tpu.memory_space<vmem>>, vector<1x128x128xbf16>
    %2 = vector.shape_cast %1 : vector<1x128x128xbf16> to vector<128x128xbf16>
    %cst = arith.constant dense<0.000000e+00> : vector<8x128xf32>
    %3 = tpu.matmul %0, %2, %cst {dimension_numbers = #tpu.dot_dimension_numbers<[1], [0], [0], [1], [0, 0, 1, 1], [], []>} : vector<8x128xbf16>, vector<128x128xbf16>, vector<8x128xf32> -> vector<8x128xf32>
    %4 = arith.index_cast %arg0 : i32 to index
    %c0_4 = arith.constant 0 : index
    %c0_5 = arith.constant 0 : index
    %5 = vector.load %arg3[%4, %c0_4, %c0_5] : memref<3x1x128xf32, #tpu.memory_space<vmem>>, vector<1x1x128xf32>
    %6 = vector.shape_cast %5 : vector<1x1x128xf32> to vector<1x128xf32>
    %7 = vector.broadcast %6 : vector<1x128xf32> to vector<8x128xf32>
    %8 = arith.addf %3, %7 : vector<8x128xf32>
    %c0_6 = arith.constant 0 : index
    %c0_7 = arith.constant 0 : index
    %9 = vector.load %arg4[%c0_6, %c0_7] : memref<8x128xf32, #tpu.memory_space<vmem>>, vector<8x128xf32>
    tpu.vector_store %arg4[%c0_6, %c0_7], %8 {strides = array<i32>} : memref<8x128xf32, #tpu.memory_space<vmem>>, vector<8x128xf32>,
    return
  }
  func.func @transform_0(%arg0: i32) -> (i32, i32) {
    %c0_i32 = arith.constant 0 : i32
    %c0_i32_0 = arith.constant 0 : i32
    %c0_i32_1 = arith.constant 0 : i32
    return %c0_i32, %c0_i32_0 : i32, i32
  }
  func.func @transform_1(%arg0: i32) -> (i32, i32, i32) {
    %c0_i32 = arith.constant 0 : i32
    %c0_i32_0 = arith.constant 0 : i32
    %c0_i32_1 = arith.constant 0 : i32
    return %arg0, %c0_i32, %c0_i32_0 : i32, i32, i32
  }
  func.func @transform_2(%arg0: i32) -> (i32, i32, i32) {
    %c0_i32 = arith.constant 0 : i32
    %c0_i32_0 = arith.constant 0 : i32
    %c0_i32_1 = arith.constant 0 : i32
    %c0_i32_2 = arith.constant 0 : i32
    return %c0_i32, %c0_i32_0, %c0_i32_1 : i32, i32, i32
  }
  func.func @transform_3(%arg0: i32) -> (i32, i32) {
    %c0_i32 = arith.constant 0 : i32
    %c0_i32_0 = arith.constant 0 : i32
    return %c0_i32, %arg0 : i32, i32
  }
}

</mosaic_0001>

<llo_original>
// kernel: entity_predictor_forward.2
$region0: #{entity_predictor_forward.2}
  #allocation0 [shape = 'u32[]', space=smem, size = 0x4, offset = 0x4, fixed_abs, tag = 'smem constant byte address 0x4 - core index']
  #allocation1 [shape = 'u32[144,128]{1,0:T(1,128)}', space=vmem, size = 0x12000, scoped, tag = 'internal scratch']
  %s0 = inlined_call_operand.vmem [shape: bf16[8,128], index: 0, kind: input, shape index: {}]
  %s1 = inlined_call_operand.hbm [shape: bf16[128,128], index: 1, kind: input, shape index: {}]
  %s2 = inlined_call_operand.vmem [shape: f32[1,128], index: 2, kind: input, shape index: {}]
  %s3 = inlined_call_operand.hbm [shape: bf16[128,128], index: 3, kind: input, shape index: {}]
  %s4 = inlined_call_operand.vmem [shape: f32[1,128], index: 4, kind: input, shape index: {}]
  %s5 = inlined_call_operand.vmem [shape: bf16[8,128], index: 5, kind: output, shape index: {}]
  %s6 = sld [smem:[#allocation0]]
  $region38: #{entity_predictor_forward.2} parent=0
    _
  %s8 = ssub.s32 1, %s6
  %s9 = scalar_select 0, %s8, %s6
  $region1: #{entity_predictor_forward.2} parent=0
    #allocation2 [shape = 'u8[32768]{0}', space=vmem, size = 0x8000, scoped, tag = 'input window, operand 1, single buffered']
    #allocation3 [shape = 's32[1]{0}', space=sflag, size = 0x4, scoped, tag = 'scoped memory for entity_predictor_forward.2']
    #allocation4 [shape = 'u8[32768]{0}', space=vmem, size = 0x8000, scoped, tag = 'input window, operand 3, single buffered']
    #allocation5 [shape = 's32[1]{0}', space=sflag, size = 0x4, scoped, tag = 'scoped memory for entity_predictor_forward.2']
    %10 = vsyncpa [#allocation3], 0
    %11 = vsyncpa [#allocation5], 0
    // Predicated region
    $region2: #{entity_predictor_forward.2} parent=1 // pred_check
      _
    $region3: #{entity_predictor_forward.2} parent=1 // pred_check_branch
      %13 = sbr.rel (0) target = $region5
    $region4: #{entity_predictor_forward.2} parent=1 // pred_region
      _
    $region5: #{entity_predictor_forward.2} parent=1 // pred_fallthru
      _
    // Predicated region
    $region6: #{entity_predictor_forward.2} parent=1 // pred_check
      _
    $region7: #{entity_predictor_forward.2} parent=1 // pred_check_branch
      %15 = sbr.rel (0) target = $region9
    $region8: #{entity_predictor_forward.2} parent=1 // pred_region
      %s17 = ssub.s32 1024, 1024
      %18 = vsyncadd [#allocation3], %s17
      %s19 = sshll.u32 [#allocation2], 4
      %s20 = int_to_ptr.vmem [resolvable:$true] %s19
      %25 = dma.hbm_to_vmem [thread:$0]  %s1, 1024, %s20, [#allocation3], 64, 64, 4
    $region9: #{entity_predictor_forward.2} parent=1 // pred_fallthru
      _
    // Predicated region
    $region10: #{entity_predictor_forward.2} parent=1 // pred_check
      _
    $region11: #{entity_predictor_forward.2} parent=1 // pred_check_branch
      %27 = sbr.rel (0) target = $region13
    $region12: #{entity_predictor_forward.2} parent=1 // pred_region
      _
    $region13: #{entity_predictor_forward.2} parent=1 // pred_fallthru
      _
    // Predicated region
    $region14: #{entity_predictor_forward.2} parent=1 // pred_check
      _
    $region15: #{entity_predictor_forward.2} parent=1 // pred_check_branch
      %29 = sbr.rel (0) target = $region17
    $region16: #{entity_predictor_forward.2} parent=1 // pred_region
      %s31 = ssub.s32 1024, 1024
      %32 = vsyncadd [#allocation5], %s31
      %s33 = sshll.u32 [#allocation4], 4
      %s34 = int_to_ptr.vmem [resolvable:$true] %s33
      %39 = dma.hbm_to_vmem [thread:$0]  %s3, 1024, %s34, [#allocation5], 64, 64, 4
    $region17: #{entity_predictor_forward.2} parent=1 // pred_fallthru
      _
    // Predicated region
    $region18: #{entity_predictor_forward.2} parent=1 // pred_check
      _
    $region19: #{entity_predictor_forward.2} parent=1 // pred_check_branch
      %41 = sbr.rel (0) target = $region21
    $region20: #{entity_predictor_forward.2} parent=1 // pred_region
      _
    $region21: #{entity_predictor_forward.2} parent=1 // pred_fallthru
      _
    // Predicated region
    $region22: #{entity_predictor_forward.2} parent=1 // pred_check
      _
    $region23: #{entity_predictor_forward.2} parent=1 // pred_check_branch
      %43 = sbr.rel (0) target = $region25
    $region24: #{entity_predictor_forward.2} parent=1 // pred_region
      %44 = dma.done [#allocation3], 1024
    $region25: #{entity_predictor_forward.2} parent=1 // pred_fallthru
      _
    // Predicated region
    $region26: #{entity_predictor_forward.2} parent=1 // pred_check
      _
    $region27: #{entity_predictor_forward.2} parent=1 // pred_check_branch
      %46 = sbr.rel (0) target = $region29
    $region28: #{entity_predictor_forward.2} parent=1 // pred_region
      %47 = dma.done [#allocation5], 1024
    $region29: #{entity_predictor_forward.2} parent=1 // pred_fallthru
      _
    %v49 = vld [vmem:[%s0] sm:$0xf]
    %v50 = vld [vmem:[#allocation2] sm:$0xf]
    %v51 = vld [vmem:[#allocation2 + $0x4] sm:$0xf]
    %v52 = vld [vmem:[#allocation2 + $0x8] sm:$0xf]
    %v53 = vld [vmem:[#allocation2 + $0xc] sm:$0xf]
    %v54 = vld [vmem:[#allocation2 + $0x10] sm:$0xf]
    %v55 = vld [vmem:[#allocation2 + $0x14] sm:$0xf]
    %v56 = vld [vmem:[#allocation2 + $0x18] sm:$0xf]
    %v57 = vld [vmem:[#allocation2 + $0x1c] sm:$0xf]
    %v58 = vld [vmem:[#allocation2 + $0x20] sm:$0xf]
    %v59 = vld [vmem:[#allocation2 + $0x24] sm:$0xf]
    %v60 = vld [vmem:[#allocation2 + $0x28] sm:$0xf]
    %v61 = vld [vmem:[#allocation2 + $0x2c] sm:$0xf]
    %v62 = vld [vmem:[#allocation2 + $0x30] sm:$0xf]
    %v63 = vld [vmem:[#allocation2 + $0x34] sm:$0xf]
    %v64 = vld [vmem:[#allocation2 + $0x38] sm:$0xf]
    %v65 = vld [vmem:[#allocation2 + $0x3c] sm:$0xf]
    %v66 = vld [vmem:[%s2] sm:$0x1]
    %v68 = vlaneseq
    %v69 = vshrl.u32 %v68, 7
    %v70 = vsub.s32 0, %v69
    %v71 = vrot.slane %v66, %v70
    %v89 = vunpack.c.l.b16 %v50
    %v90 = vunpack.c.l.b16 %v51
    %v91 = vunpack.c.l.b16 %v52
    %v92 = vunpack.c.l.b16 %v53
    %v93 = vunpack.c.l.b16 %v54
    %v94 = vunpack.c.l.b16 %v55
    %v95 = vunpack.c.l.b16 %v56
    %v96 = vunpack.c.l.b16 %v57
    %v97 = vunpack.c.l.b16 %v58
    %v98 = vunpack.c.l.b16 %v59
    %v99 = vunpack.c.l.b16 %v60
    %v100 = vunpack.c.l.b16 %v61
    %v101 = vunpack.c.l.b16 %v62
    %v102 = vunpack.c.l.b16 %v63
    %v103 = vunpack.c.l.b16 %v64
    %v104 = vunpack.c.l.b16 %v65
    %v105 = vpack.c.b16 %v90, %v89
    %v106 = vpack.c.b16 %v92, %v91
    %v107 = vpack.c.b16 %v94, %v93
    %v108 = vpack.c.b16 %v96, %v95
    %v109 = vpack.c.b16 %v98, %v97
    %v110 = vpack.c.b16 %v100, %v99
    %v111 = vpack.c.b16 %v102, %v101
    %v112 = vpack.c.b16 %v104, %v103
    %121 = vmatprep.subr.bf16.mxu0 0
    %122 = vmatpush1.bf16.msra.mxu0 %v105
    %123 = vmatprep.subr.bf16.mxu0 0
    %124 = vmatpush1.bf16.msra.mxu0 %v106
    %125 = vmatprep.subr.bf16.mxu0 0
    %126 = vmatpush1.bf16.msra.mxu0 %v107
    %127 = vmatprep.subr.bf16.mxu0 0
    %128 = vmatpush1.bf16.msra.mxu0 %v108
    %129 = vmatprep.subr.bf16.mxu0 0
    %130 = vmatpush1.bf16.msra.mxu0 %v109
    %131 = vmatprep.subr.bf16.mxu0 0
    %132 = vmatpush1.bf16.msra.mxu0 %v110
    %133 = vmatprep.subr.bf16.mxu0 0
    %134 = vmatpush1.bf16.msra.mxu0 %v111
    %135 = vmatprep.subr.bf16.mxu0 0
    %136 = vmatpush1.bf16.msra.mxu0 %v112
    %137 = vmatprep.subr.bf16.mxu0 0
    %138 = vmatpush1.bf16.msra.mxu0 0
    %139 = vmatprep.subr.bf16.mxu0 0
    %140 = vmatpush1.bf16.msra.mxu0 0
    %141 = vmatprep.subr.bf16.mxu0 0
    %142 = vmatpush1.bf16.msra.mxu0 0
    %143 = vmatprep.subr.bf16.mxu0 0
    %144 = vmatpush1.bf16.msra.mxu0 0
    %145 = vmatprep.subr.bf16.mxu0 0
    %146 = vmatpush1.bf16.msra.mxu0 0
    %147 = vmatprep.subr.bf16.mxu0 0
    %148 = vmatpush1.bf16.msra.mxu0 0
    %149 = vmatprep.subr.bf16.mxu0 0
    %150 = vmatpush1.bf16.msra.mxu0 0
    %151 = vmatprep.subr.bf16.mxu0 0
    %152 = vmatpush1.bf16.msra.mxu0 0
    %153 = vmatprep.mubr.bf16.mxu0 0
    %154 = vmatmul.mubr.bf16.gmra.mrb[0].mxu0 %v49
    %v155 = vpop.f32.mrb[0].mxu0
    %v156 = vadd.f32 %v71, %v155
    %v157 = vpop.f32.mrb[0].mxu0
    %v158 = vpop.f32.mrb[0].mxu0
    %v159 = vpop.f32.mrb[0].mxu0
    %160 = vdwg.mxu0
    %v161 = vmax.f32 %v156, 0.0
    %v162 = vpack.c.bf16 %v161, %v161
    %v163 = vld [vmem:[#allocation4] sm:$0xf]
    %v164 = vld [vmem:[#allocation4 + $0x4] sm:$0xf]
    %v165 = vld [vmem:[#allocation4 + $0x8] sm:$0xf]
    %v166 = vld [vmem:[#allocation4 + $0xc] sm:$0xf]
    %v167 = vld [vmem:[#allocation4 + $0x10] sm:$0xf]
    %v168 = vld [vmem:[#allocation4 + $0x14] sm:$0xf]
    %v169 = vld [vmem:[#allocation4 + $0x18] sm:$0xf]
    %v170 = vld [vmem:[#allocation4 + $0x1c] sm:$0xf]
    %v171 = vld [vmem:[#allocation4 + $0x20] sm:$0xf]
    %v172 = vld [vmem:[#allocation4 + $0x24] sm:$0xf]
    %v173 = vld [vmem:[#allocation4 + $0x28] sm:$0xf]
    %v174 = vld [vmem:[#allocation4 + $0x2c] sm:$0xf]
    %v175 = vld [vmem:[#allocation4 + $0x30] sm:$0xf]
    %v176 = vld [vmem:[#allocation4 + $0x34] sm:$0xf]
    %v177 = vld [vmem:[#allocation4 + $0x38] sm:$0xf]
    %v178 = vld [vmem:[#allocation4 + $0x3c] sm:$0xf]
    %v179 = vld [vmem:[%s4] sm:$0x1]
    %v181 = vlaneseq
    %v182 = vshrl.u32 %v181, 7
    %v183 = vsub.s32 0, %v182
    %v184 = vrot.slane %v179, %v183
    %v202 = vunpack.c.l.b16 %v163
    %v203 = vunpack.c.l.b16 %v164
    %v204 = vunpack.c.l.b16 %v165
    %v205 = vunpack.c.l.b16 %v166
    %v206 = vunpack.c.l.b16 %v167
    %v207 = vunpack.c.l.b16 %v168
    %v208 = vunpack.c.l.b16 %v169
    %v209 = vunpack.c.l.b16 %v170
    %v210 = vunpack.c.l.b16 %v171
    %v211 = vunpack.c.l.b16 %v172
    %v212 = vunpack.c.l.b16 %v173
    %v213 = vunpack.c.l.b16 %v174
    %v214 = vunpack.c.l.b16 %v175
    %v215 = vunpack.c.l.b16 %v176
    %v216 = vunpack.c.l.b16 %v177
    %v217 = vunpack.c.l.b16 %v178
    %v218 = vpack.c.b16 %v203, %v202
    %v219 = vpack.c.b16 %v205, %v204
    %v220 = vpack.c.b16 %v207, %v206
    %v221 = vpack.c.b16 %v209, %v208
    %v222 = vpack.c.b16 %v211, %v210
    %v223 = vpack.c.b16 %v213, %v212
    %v224 = vpack.c.b16 %v215, %v214
    %v225 = vpack.c.b16 %v217, %v216
    %234 = vmatprep.subr.bf16.mxu0 0
    %235 = vmatpush1.bf16.msra.mxu0 %v218
    %236 = vmatprep.subr.bf16.mxu0 0
    %237 = vmatpush1.bf16.msra.mxu0 %v219
    %238 = vmatprep.subr.bf16.mxu0 0
    %239 = vmatpush1.bf16.msra.mxu0 %v220
    %240 = vmatprep.subr.bf16.mxu0 0
    %241 = vmatpush1.bf16.msra.mxu0 %v221
    %242 = vmatprep.subr.bf16.mxu0 0
    %243 = vmatpush1.bf16.msra.mxu0 %v222
    %244 = vmatprep.subr.bf16.mxu0 0
    %245 = vmatpush1.bf16.msra.mxu0 %v223
    %246 = vmatprep.subr.bf16.mxu0 0
    %247 = vmatpush1.bf16.msra.mxu0 %v224
    %248 = vmatprep.subr.bf16.mxu0 0
    %249 = vmatpush1.bf16.msra.mxu0 %v225
    %250 = vmatprep.subr.bf16.mxu0 0
    %251 = vmatpush1.bf16.msra.mxu0 0
    %252 = vmatprep.subr.bf16.mxu0 0
    %253 = vmatpush1.bf16.msra.mxu0 0
    %254 = vmatprep.subr.bf16.mxu0 0
    %255 = vmatpush1.bf16.msra.mxu0 0
    %256 = vmatprep.subr.bf16.mxu0 0
    %257 = vmatpush1.bf16.msra.mxu0 0
    %258 = vmatprep.subr.bf16.mxu0 0
    %259 = vmatpush1.bf16.msra.mxu0 0
    %260 = vmatprep.subr.bf16.mxu0 0
    %261 = vmatpush1.bf16.msra.mxu0 0
    %262 = vmatprep.subr.bf16.mxu0 0
    %263 = vmatpush1.bf16.msra.mxu0 0
    %264 = vmatprep.subr.bf16.mxu0 0
    %265 = vmatpush1.bf16.msra.mxu0 0
    %266 = vmatprep.mubr.bf16.mxu0 0
    %267 = vmatmul.mubr.bf16.gmra.mrb[0].mxu0 %v162
    %v268 = vpop.f32.mrb[0].mxu0
    %v269 = vadd.f32 %v184, %v268
    %v270 = vpop.f32.mrb[0].mxu0
    %v271 = vpop.f32.mrb[0].mxu0
    %v272 = vpop.f32.mrb[0].mxu0
    %273 = vdwg.mxu0
    %v274 = vmax.f32 %v269, 0.0
    %v275 = vlaneseq
    %v276 = vshrl.u32 %v275, 7
    %vm277 = vcmp.lt.s32.totalorder %v276, 2
    %v278 = vsel %vm277, %v274, 0.0
    %v279 = vpack.c.bf16 %v278, %v278
    %280 = vst [vmem:[%s5] sm:$0xf] %v279
    // Predicated region
    $region30: #{entity_predictor_forward.2} parent=1 // pred_check
      _
    $region31: #{entity_predictor_forward.2} parent=1 // pred_check_branch
      %282 = sbr.rel (0) target = $region33
    $region32: #{entity_predictor_forward.2} parent=1 // pred_region
      _
    $region33: #{entity_predictor_forward.2} parent=1 // pred_fallthru
      _
    // Predicated region
    $region34: #{entity_predictor_forward.2} parent=1 // pred_check
      _
    $region35: #{entity_predictor_forward.2} parent=1 // pred_check_branch
      %284 = sbr.rel (0) target = $region37
    $region36: #{entity_predictor_forward.2} parent=1 // pred_region
      _
    $region37: #{entity_predictor_forward.2} parent=1 // pred_fallthru
      _
    %285 = vsyncpa [#allocation3], 1
    %286 = vsyncpa [#allocation5], 1

// kernel: entity_predictor_forward.3
$region0: #{entity_predictor_forward.3}
  #allocation0 [shape = 'u32[]', space=smem, size = 0x4, offset = 0x4, fixed_abs, tag = 'smem constant byte address 0x4 - core index']
  #allocation1 [shape = 'u32[144,128]{1,0:T(1,128)}', space=vmem, size = 0x12000, scoped, tag = 'internal scratch']
  %s0 = inlined_call_operand.vmem [shape: bf16[8,128], index: 0, kind: input, shape index: {}]
  %s1 = inlined_call_operand.hbm [shape: bf16[3,128,128], index: 1, kind: input, shape index: {}]
  %s2 = inlined_call_operand.vmem [shape: f32[3,1,128], index: 2, kind: input, shape index: {}]
  %s3 = inlined_call_operand.vmem [shape: f32[8,384], index: 3, kind: output, shape index: {}]
  %s4 = sld [smem:[#allocation0]]
  $region49: #{entity_predictor_forward.3} parent=0
    _
  %s6 = ssub.s32 1, %s4
  %s7 = scalar_select 0, %s6, %s4
  $region1: #{entity_predictor_forward.3} parent=0
    #allocation2 [shape = 'u8[65536]{0}', space=vmem, size = 0x10000, scoped, tag = 'input window, operand 1']
    #allocation3 [shape = 's32[2]{0}', space=sflag, size = 0x8, scoped, tag = 'scoped memory for entity_predictor_forward.3']
    %8 = vsyncpa [#allocation3], 0
    %s9 = scalar_lea.sflag [#allocation3], 1
    %10 = vsyncpa %s9, 0
    loop: start=0, step=1, limit=5
    $region2: #{entity_predictor_forward.3} parent=1 // loop_pre_header
      _
    $region3: #{entity_predictor_forward.3} parent=1 // loop_header
      %s12 = sphi 0, %s16
      %p13 = scmp.ge.s32.totalorder %s12, 5
      %s20 = sphi 0, %s20
      %s22 = sphi 0, %s20
      %s23 = sphi 0, %s22
      %s37 = sphi 0, %s23
      %s43 = sphi 0, %s45
      %s46 = sphi 0, %s43
      %s47 = sphi 0, %s46
      %s63 = sphi 0, %s47
      %s67 = sphi 0, %s67
      %s69 = sphi 0, %s67
      %s70 = sphi 0, %s69
      %s84 = sphi 0, %s70
      %s90 = sphi 0, %s92
      %s93 = sphi 0, %s90
      %s94 = sphi 0, %s93
      %s110 = sphi 0, %s94
    $region4: #{entity_predictor_forward.3} parent=1 // loop_header_branch
      %15 = sbr.rel (%p13) target = $region8
    $region5: #{entity_predictor_forward.3} parent=1 // loop_body
      %s17 = ssub.s32 %s12, 1
      %s18 = ssub.s32 %s12, 2
      %s19 = sadd.s32 %s12, 1
      %s21 = sadd.s32 %s20, 1
      %p24 = scmp.eq.s32.totalorder %s12, 2
      %p25 = scmp.ne.s32.totalorder %s20, %s22
      %p26 = scmp.eq.s32.totalorder %s12, 0
      %p27 = por %p25, %p26
      %p28 = scmp.ne.s32.totalorder %s20, %s22
      %p29 = scmp.eq.s32.totalorder %s17, 2
      %p30 = por %p28, %p29
      %p31 = scmp.ne.s32.totalorder %s22, %s23
      %p32 = scmp.eq.s32.totalorder %s17, 0
      %p33 = por %p31, %p32
      %p34 = scmp.ne.s32.totalorder %s22, %s23
      %p35 = scmp.eq.s32.totalorder %s18, 2
      %p36 = por %p34, %p35
      %p38 = scmp.ne.s32.totalorder %s23, %s37
      %p39 = scmp.eq.s32.totalorder %s18, 0
      %p40 = por %p38, %p39
      %s41 = ssub.s32 %s12, %s19
      %p42 = scmp.eq.s32.totalorder %s41, 0
      %s44 = sadd.s32 %s43, 1
      %s45 = scalar_select %p42, %s43, %s44
      %p48 = pneg %p42
      %p49 = scmp.eq.s32.totalorder %s12, 2
      %p50 = por %p48, %p49
      %p51 = scmp.ne.s32.totalorder %s43, %s46
      %p52 = scmp.eq.s32.totalorder %s12, 0
      %p53 = por %p51, %p52
      %p54 = scmp.ne.s32.totalorder %s43, %s46
      %p55 = scmp.eq.s32.totalorder %s17, 2
      %p56 = por %p54, %p55
      %p57 = scmp.ne.s32.totalorder %s46, %s47
      %p58 = scmp.eq.s32.totalorder %s17, 0
      %p59 = por %p57, %p58
      %p60 = scmp.ne.s32.totalorder %s46, %s47
      %p61 = scmp.eq.s32.totalorder %s18, 2
      %p62 = por %p60, %p61
      %p64 = scmp.ne.s32.totalorder %s47, %s63
      %p65 = scmp.eq.s32.totalorder %s18, 0
      %p66 = por %p64, %p65
      %s68 = sadd.s32 %s67, 1
      %p71 = scmp.eq.s32.totalorder %s12, 2
      %p72 = scmp.ne.s32.totalorder %s67, %s69
      %p73 = scmp.eq.s32.totalorder %s12, 0
      %p74 = por %p72, %p73
      %p75 = scmp.ne.s32.totalorder %s67, %s69
      %p76 = scmp.eq.s32.totalorder %s17, 2
      %p77 = por %p75, %p76
      %p78 = scmp.ne.s32.totalorder %s69, %s70
      %p79 = scmp.eq.s32.totalorder %s17, 0
      %p80 = por %p78, %p79
      %p81 = scmp.ne.s32.totalorder %s69, %s70
      %p82 = scmp.eq.s32.totalorder %s18, 2
      %p83 = por %p81, %p82
      %p85 = scmp.ne.s32.totalorder %s70, %s84
      %p86 = scmp.eq.s32.totalorder %s18, 0
      %p87 = por %p85, %p86
      %s88 = ssub.s32 %s12, %s19
      %p89 = scmp.eq.s32.totalorder %s88, 0
      %s91 = sadd.s32 %s90, 1
      %s92 = scalar_select %p89, %s90, %s91
      %p95 = pneg %p89
      %p96 = scmp.eq.s32.totalorder %s12, 2
      %p97 = por %p95, %p96
      %p98 = scmp.ne.s32.totalorder %s90, %s93
      %p99 = scmp.eq.s32.totalorder %s12, 0
      %p100 = por %p98, %p99
      %p101 = scmp.ne.s32.totalorder %s90, %s93
      %p102 = scmp.eq.s32.totalorder %s17, 2
      %p103 = por %p101, %p102
      %p104 = scmp.ne.s32.totalorder %s93, %s94
      %p105 = scmp.eq.s32.totalorder %s17, 0
      %p106 = por %p104, %p105
      %p107 = scmp.ne.s32.totalorder %s93, %s94
      %p108 = scmp.eq.s32.totalorder %s18, 2
      %p109 = por %p107, %p108
      %p111 = scmp.ne.s32.totalorder %s94, %s110
      %p112 = scmp.eq.s32.totalorder %s18, 0
      %p113 = por %p111, %p112
      %p114 = scmp.le.s32.totalorder 1, %s12
      %p115 = scmp.lt.s32.totalorder %s12, 4
      %p116 = pnand %p114, %p115
      %p117 = pneg %p116
      // Predicated region
      $region9: #{entity_predictor_forward.3} parent=5 // pred_check
        _
      $region10: #{entity_predictor_forward.3} parent=5 // pred_check_branch
        %119 = sbr.rel (%p116) target = $region12
      $region11: #{entity_predictor_forward.3} parent=5 // pred_region
        %s120 = ssub.s32 %s12, 1
        // Predicated region
        $region13: #{entity_predictor_forward.3} parent=11 // pred_check
          %p121 = pneg %p33
        $region14: #{entity_predictor_forward.3} parent=11 // pred_check_branch
          %123 = sbr.rel (%p121) target = $region16
        $region15: #{entity_predictor_forward.3} parent=11 // pred_region
          _
        $region16: #{entity_predictor_forward.3} parent=11 // pred_fallthru
          _
        // Predicated region
        $region17: #{entity_predictor_forward.3} parent=11 // pred_check
          %p124 = pneg %p80
        $region18: #{entity_predictor_forward.3} parent=11 // pred_check_branch
          %126 = sbr.rel (%p124) target = $region20
        $region19: #{entity_predictor_forward.3} parent=11 // pred_region
          _
        $region20: #{entity_predictor_forward.3} parent=11 // pred_fallthru
          _
      $region12: #{entity_predictor_forward.3} parent=5 // pred_fallthru
        _
      %p127 = scmp.lt.s32.totalorder %s12, 3
      // Predicated region
      $region21: #{entity_predictor_forward.3} parent=5 // pred_check
        %p128 = pneg %p127
      $region22: #{entity_predictor_forward.3} parent=5 // pred_check_branch
        %130 = sbr.rel (%p128) target = $region24
      $region23: #{entity_predictor_forward.3} parent=5 // pred_region
        // Predicated region
        $region25: #{entity_predictor_forward.3} parent=23 // pred_check
          %p131 = pneg %p53
        $region26: #{entity_predictor_forward.3} parent=23 // pred_check_branch
          %133 = sbr.rel (%p131) target = $region28
        $region27: #{entity_predictor_forward.3} parent=23 // pred_region
          %s134 = sand.u32 %s43, 1
          %s135 = scalar_lea.sflag [#allocation3], %s134
          %s136 = sand.u32 %s43, 1
          %s137 = smul.addr %s136, 64
          %s138 = scalar_lea.vmem [#allocation2], %s137
          %s140 = ssub.s32 1024, 1024
          %141 = vsyncadd %s135, %s140
          %s142 = smul.addr %s12, 16
          %s143 = smul.addr %s142, 64
          %s144 = scalar_lea.hbm %s1, %s143
          %s145 = sshll.u32 %s138, 4
          %s146 = int_to_ptr.vmem [resolvable:$true] %s145
          %151 = dma.hbm_to_vmem [thread:$0]  %s144, 1024, %s146, %s135, 64, 64, 4
        $region28: #{entity_predictor_forward.3} parent=23 // pred_fallthru
          _
      $region24: #{entity_predictor_forward.3} parent=5 // pred_fallthru
        _
      %p152 = scmp.le.s32.totalorder 1, %s12
      %p153 = scmp.lt.s32.totalorder %s12, 4
      %p154 = pnand %p152, %p153
      %p155 = pneg %p154
      // Predicated region
      $region29: #{entity_predictor_forward.3} parent=5 // pred_check
        _
      $region30: #{entity_predictor_forward.3} parent=5 // pred_check_branch
        %157 = sbr.rel (%p154) target = $region32
      $region31: #{entity_predictor_forward.3} parent=5 // pred_region
        %s158 = ssub.s32 %s12, 1
        %s159 = sand.u32 %s46, 1
        %s160 = scalar_lea.sflag [#allocation3], %s159
        %s161 = sand.u32 %s46, 1
        %s162 = smul.addr %s161, 64
        %s163 = scalar_lea.vmem [#allocation2], %s162
        // Predicated region
        $region33: #{entity_predictor_forward.3} parent=31 // pred_check
          %p164 = pneg %p59
        $region34: #{entity_predictor_forward.3} parent=31 // pred_check_branch
          %166 = sbr.rel (%p164) target = $region36
        $region35: #{entity_predictor_forward.3} parent=31 // pred_region
          %167 = dma.done %s160, 1024
        $region36: #{entity_predictor_forward.3} parent=31 // pred_fallthru
          _
        %p168 = pneg %p33
        %p169 = pneg %p30
        %s170 = sand.u32 %s46, 1
        %s171 = scalar_lea.sflag [#allocation3], %s170
        %s172 = sand.u32 %s46, 1
        %s173 = smul.addr %s172, 64
        %s174 = scalar_lea.vmem [#allocation2], %s173
        %p175 = pneg %p59
        %p176 = pneg %p56
        %p177 = pneg %p80
        %p178 = pneg %p77
        %p179 = pneg %p106
        %p180 = pneg %p103
        %p181 = scmp.lt.s32.totalorder %s17, 2
        %s182 = scalar_select %p181, %s17, 2
        %s183 = smul.addr %s182, 8
        %s184 = scalar_lea.vmem %s3, %s183
        %p185 = scmp.lt.s32.totalorder %s17, 2
        %s186 = scalar_select %p185, %s17, 2
        %s187 = smul.addr %s186, 8
        %s188 = scalar_lea.vmem %s3, %s187
        %v190 = vld [vmem:[%s0] sm:$0xf]
        %v191 = vld [vmem:[%s163] sm:$0xf]
        %v192 = vld [vmem:[%s163 + $0x4] sm:$0xf]
        %v193 = vld [vmem:[%s163 + $0x8] sm:$0xf]
        %v194 = vld [vmem:[%s163 + $0xc] sm:$0xf]
        %v195 = vld [vmem:[%s163 + $0x10] sm:$0xf]
        %v196 = vld [vmem:[%s163 + $0x14] sm:$0xf]
        %v197 = vld [vmem:[%s163 + $0x18] sm:$0xf]
        %v198 = vld [vmem:[%s163 + $0x1c] sm:$0xf]
        %v199 = vld [vmem:[%s163 + $0x20] sm:$0xf]
        %v200 = vld [vmem:[%s163 + $0x24] sm:$0xf]
        %v201 = vld [vmem:[%s163 + $0x28] sm:$0xf]
        %v202 = vld [vmem:[%s163 + $0x2c] sm:$0xf]
        %v203 = vld [vmem:[%s163 + $0x30] sm:$0xf]
        %v204 = vld [vmem:[%s163 + $0x34] sm:$0xf]
        %v205 = vld [vmem:[%s163 + $0x38] sm:$0xf]
        %v206 = vld [vmem:[%s163 + $0x3c] sm:$0xf]
        %s207 = scalar_lea.vmem %s2, %s17
        %v208 = vld [vmem:[%s207] sm:$0x1]
        %v210 = vlaneseq
        %v211 = vshrl.u32 %v210, 7
        %v212 = vsub.s32 0, %v211
        %v213 = vrot.slane %v208, %v212
        %v231 = vunpack.c.l.b16 %v191
        %v232 = vunpack.c.l.b16 %v192
        %v233 = vunpack.c.l.b16 %v193
        %v234 = vunpack.c.l.b16 %v194
        %v235 = vunpack.c.l.b16 %v195
        %v236 = vunpack.c.l.b16 %v196
        %v237 = vunpack.c.l.b16 %v197
        %v238 = vunpack.c.l.b16 %v198
        %v239 = vunpack.c.l.b16 %v199
        %v240 = vunpack.c.l.b16 %v200
        %v241 = vunpack.c.l.b16 %v201
        %v242 = vunpack.c.l.b16 %v202
        %v243 = vunpack.c.l.b16 %v203
        %v244 = vunpack.c.l.b16 %v204
        %v245 = vunpack.c.l.b16 %v205
        %v246 = vunpack.c.l.b16 %v206
        %v247 = vpack.c.b16 %v232, %v231
        %v248 = vpack.c.b16 %v234, %v233
        %v249 = vpack.c.b16 %v236, %v235
        %v250 = vpack.c.b16 %v238, %v237
        %v251 = vpack.c.b16 %v240, %v239
        %v252 = vpack.c.b16 %v242, %v241
        %v253 = vpack.c.b16 %v244, %v243
        %v254 = vpack.c.b16 %v246, %v245
        %263 = vmatprep.subr.bf16.mxu0 0
        %264 = vmatpush1.bf16.msra.mxu0 %v247
        %265 = vmatprep.subr.bf16.mxu0 0
        %266 = vmatpush1.bf16.msra.mxu0 %v248
        %267 = vmatprep.subr.bf16.mxu0 0
        %268 = vmatpush1.bf16.msra.mxu0 %v249
        %269 = vmatprep.subr.bf16.mxu0 0
        %270 = vmatpush1.bf16.msra.mxu0 %v250
        %271 = vmatprep.subr.bf16.mxu0 0
        %272 = vmatpush1.bf16.msra.mxu0 %v251
        %273 = vmatprep.subr.bf16.mxu0 0
        %274 = vmatpush1.bf16.msra.mxu0 %v252
        %275 = vmatprep.subr.bf16.mxu0 0
        %276 = vmatpush1.bf16.msra.mxu0 %v253
        %277 = vmatprep.subr.bf16.mxu0 0
        %278 = vmatpush1.bf16.msra.mxu0 %v254
        %279 = vmatprep.subr.bf16.mxu0 0
        %280 = vmatpush1.bf16.msra.mxu0 0
        %281 = vmatprep.subr.bf16.mxu0 0
        %282 = vmatpush1.bf16.msra.mxu0 0
        %283 = vmatprep.subr.bf16.mxu0 0
        %284 = vmatpush1.bf16.msra.mxu0 0
        %285 = vmatprep.subr.bf16.mxu0 0
        %286 = vmatpush1.bf16.msra.mxu0 0
        %287 = vmatprep.subr.bf16.mxu0 0
        %288 = vmatpush1.bf16.msra.mxu0 0
        %289 = vmatprep.subr.bf16.mxu0 0
        %290 = vmatpush1.bf16.msra.mxu0 0
        %291 = vmatprep.subr.bf16.mxu0 0
        %292 = vmatpush1.bf16.msra.mxu0 0
        %293 = vmatprep.subr.bf16.mxu0 0
        %294 = vmatpush1.bf16.msra.mxu0 0
        %295 = vmatprep.mubr.bf16.mxu0 0
        %296 = vmatmul.mubr.bf16.gmra.mrb[0].mxu0 %v190
        %v297 = vpop.f32.mrb[0].mxu0
        %v298 = vadd.f32 %v213, %v297
        %v299 = vpop.f32.mrb[0].mxu0
        %v300 = vpop.f32.mrb[0].mxu0
        %v301 = vpop.f32.mrb[0].mxu0
        %302 = vdwg.mxu0
        %303 = vst [vmem:[%s188] sm:$0xff] %v298
        %p304 = scmp.lt.s32.totalorder %s17, 2
        %s305 = scalar_select %p304, %s17, 2
        %s306 = smul.addr %s305, 8
        %s307 = scalar_lea.vmem %s3, %s306
        // Predicated region
        $region37: #{entity_predictor_forward.3} parent=31 // pred_check
          %p308 = pneg %p103
        $region38: #{entity_predictor_forward.3} parent=31 // pred_check_branch
          %310 = sbr.rel (%p308) target = $region40
        $region39: #{entity_predictor_forward.3} parent=31 // pred_region
          _
        $region40: #{entity_predictor_forward.3} parent=31 // pred_fallthru
          _
      $region32: #{entity_predictor_forward.3} parent=5 // pred_fallthru
        _
      %p311 = scmp.le.s32.totalorder 2, %s12
      // Predicated region
      $region41: #{entity_predictor_forward.3} parent=5 // pred_check
        %p312 = pneg %p311
      $region42: #{entity_predictor_forward.3} parent=5 // pred_check_branch
        %314 = sbr.rel (%p312) target = $region44
      $region43: #{entity_predictor_forward.3} parent=5 // pred_region
        %s315 = ssub.s32 %s12, 2
        // Predicated region
        $region45: #{entity_predictor_forward.3} parent=43 // pred_check
          %p316 = pneg %p109
        $region46: #{entity_predictor_forward.3} parent=43 // pred_check_branch
          %318 = sbr.rel (%p316) target = $region48
        $region47: #{entity_predictor_forward.3} parent=43 // pred_region
          %p319 = scmp.lt.s32.totalorder %s18, 2
          %s320 = scalar_select %p319, %s18, 2
          %s321 = smul.addr %s320, 8
          %s322 = scalar_lea.vmem %s3, %s321
        $region48: #{entity_predictor_forward.3} parent=43 // pred_fallthru
          _
      $region44: #{entity_predictor_forward.3} parent=5 // pred_fallthru
        _
    $region6: #{entity_predictor_forward.3} parent=1 // loop_footer
      %s16 = sadd.s32 1, %s12
    $region7: #{entity_predictor_forward.3} parent=1 // loop_footer_branch
      %11 = sbr.rel target = $region3
    $region8: #{entity_predictor_forward.3} parent=1 // loop_exit
      _
    %323 = vsyncpa [#allocation3], 1
    %s324 = scalar_lea.sflag [#allocation3], 1
    %325 = vsyncpa %s324, 1

</llo_original>
